<compile_context>
chip_gen: v5e
topology: v5e:2x2
jax: 0.10.0
libtpu: 0.0.40
codegen_flags: <defaults>
</compile_context>

<pallas_src>
import math

import jax
import jax.numpy as jnp
from jax.experimental import pallas as pl
from jax.experimental.pallas import tpu as pltpu


def _pe_slice_dma_kernel(pe_ref, out_ref, sem):
    # pe_ref : (L, D) positional-embedding buffer, resident in HBM (pl.ANY)
    # out_ref: (1, S, D) forward output, resident in HBM (pl.ANY)
    # Direct HBM -> HBM DMA of the first S rows; no VMEM staging.
    S = out_ref.shape[1]
    cp = pltpu.make_async_copy(pe_ref.at[pl.ds(0, S), :], out_ref.at[0], sem)
    cp.start()
    cp.wait()


def position_embedding_forward(x, pe):
    """Forward of PositionEmbedding: returns pe[:, :x.shape[1]].

    x  : any array whose second dim is the sequence length S (only the static
         shape is used, matching `x.size(1)` in the PyTorch forward).
    pe : (1, L, D) float buffer with L >= S (the registered buffer).
    """
    S = x.shape[1]
    _, L, D = pe.shape
    assert S <= L, f"input seq length {S} exceeds buffer length {L}"

    pe2d = pe[0]  # (L, D) - buffer without the leading broadcast dim

    return pl.pallas_call(
        _pe_slice_dma_kernel,
        out_shape=jax.ShapeDtypeStruct((1, S, D), pe.dtype),
        in_specs=[pl.BlockSpec(memory_space=pl.ANY)],
        out_specs=pl.BlockSpec(memory_space=pl.ANY),
        scratch_shapes=[pltpu.SemaphoreType.DMA(())],
    )(pe2d)


def make_position_embedding(n_module, seq_length, dtype=jnp.float32):
    """Replicates PositionEmbedding.__init__'s registered buffer `pe` (1, L, D)."""
    assert n_module % 2 == 0, "n_module must be even (same assumption as the PyTorch module)"
    position = jnp.arange(seq_length, dtype=jnp.float32)[:, None]            # (L, 1)
    div_term = jnp.exp(
        jnp.arange(0, n_module, 2, dtype=jnp.float32)
        * (-math.log(10000.0) / n_module)
    )                                                                        # (D/2,)
    angles = position * div_term                                             # (L, D/2)
    pe = jnp.zeros((seq_length, n_module), dtype)
    pe = pe.at[:, 0::2].set(jnp.sin(angles).astype(dtype))
    pe = pe.at[:, 1::2].set(jnp.cos(angles).astype(dtype))
    return pe[None]                                                          # (1, L, D)


if __name__ == "__main__":
    # Small deterministic configuration consistent with the module:
    #   n_module (hidden) = 128, buffer length seq_length = 64,
    #   input x of shape (batch=2, seq=8, hidden=128).
    n_module = 128
    seq_length = 64
    batch = 2
    seq = 8

    key = jax.random.PRNGKey(0)
    pe = make_position_embedding(n_module, seq_length)                       # (1, 64, 128)
    x = jax.random.normal(key, (batch, seq, n_module), dtype=jnp.float32)    # (2, 8, 128)

    out = position_embedding_forward(x, pe)
    out = jax.block_until_ready(out)

    # Pure-JAX reference: the forward is exactly the buffer slice.
    ref = pe[:, :seq]
    assert out.shape == (1, seq, n_module)
    assert bool(jnp.array_equal(out, ref)), "mismatch vs reference"

    # Extra check: odd (non-multiple-of-8) sequence length - the direct DMA
    # handles partial row counts exactly, with no padded/masked stores.
    seq_odd = 7
    x_odd = jax.random.normal(key, (batch, seq_odd, n_module), dtype=jnp.float32)
    out_odd = jax.block_until_ready(position_embedding_forward(x_odd, pe))
    assert bool(jnp.array_equal(out_odd, pe[:, :seq_odd])), "mismatch vs reference (odd S)"

    print("KERNEL_OK")
</pallas_src>

<mosaic_0001>
module attributes {stable_mosaic.version = 11 : i64} {
  func.func @_pe_slice_dma_kernel(%arg0: memref<64x128xf32, #tpu.memory_space<any>>, %arg1: memref<1x8x128xf32, #tpu.memory_space<any>>, %arg2: memref<!tpu.dma_semaphore, #tpu.memory_space<semaphore_mem>>) attributes {dimension_semantics = [], scalar_prefetch = 0 : i64, scratch_operands = 1 : i64, tpu.core_type = #tpu.core_type<tc>} {
    %c0_i32 = arith.constant 0 : i32
    %c0_i32_0 = arith.constant 0 : i32
    %c0_i32_1 = arith.constant 0 : i32
    %0 = tpu.memref_slice %arg0[%c0_i32_0, %c0_i32_1] : memref<64x128xf32, #tpu.memory_space<any>> -> memref<8x128xf32, #tpu.memory_space<any>>
    %c0_i32_2 = arith.constant 0 : i32
    %c0_i32_3 = arith.constant 0 : i32
    %1 = tpu.memref_slice %arg1[%c0_i32, %c0_i32_2, %c0_i32_3] : memref<1x8x128xf32, #tpu.memory_space<any>> -> memref<1x8x128xf32, #tpu.memory_space<any>>
    %2 = tpu.memref_squeeze %1 : memref<1x8x128xf32, #tpu.memory_space<any>> -> memref<8x128xf32, #tpu.memory_space<any>>
    tpu.enqueue_dma source(%0 : memref<8x128xf32, #tpu.memory_space<any>>) target(%2 : memref<8x128xf32, #tpu.memory_space<any>>) target_semaphore(%arg2 : memref<!tpu.dma_semaphore, #tpu.memory_space<semaphore_mem>>)
    %c0_i32_4 = arith.constant 0 : i32
    %c0_i32_5 = arith.constant 0 : i32
    %c0_i32_6 = arith.constant 0 : i32
    %3 = tpu.memref_slice %arg0[%c0_i32_5, %c0_i32_6] : memref<64x128xf32, #tpu.memory_space<any>> -> memref<8x128xf32, #tpu.memory_space<any>>
    %c0_i32_7 = arith.constant 0 : i32
    %c0_i32_8 = arith.constant 0 : i32
    %4 = tpu.memref_slice %arg1[%c0_i32_4, %c0_i32_7, %c0_i32_8] : memref<1x8x128xf32, #tpu.memory_space<any>> -> memref<1x8x128xf32, #tpu.memory_space<any>>
    %5 = tpu.memref_squeeze %4 : memref<1x8x128xf32, #tpu.memory_space<any>> -> memref<8x128xf32, #tpu.memory_space<any>>
    tpu.wait_dma2 semaphore(%arg2 : memref<!tpu.dma_semaphore, #tpu.memory_space<semaphore_mem>>) src(%3 : memref<8x128xf32, #tpu.memory_space<any>>) dst(%5 : memref<8x128xf32, #tpu.memory_space<any>>)
    return
  }
}

</mosaic_0001>

<llo_original>
// kernel: tpu_custom_call.1
$region0: #{tpu_custom_call.1}
  #allocation0 [shape = 'u32[]', space=smem, size = 0x4, offset = 0x4, fixed_abs, tag = 'smem constant byte address 0x4 - core index']
  #allocation1 [shape = 'u32[72,128]{1,0:T(1,128)}', space=vmem, size = 0x9000, scoped, tag = 'internal scratch']
  #allocation2 [shape = 's32[1]{0}', space=sflag, size = 0x4, scoped, tag = 'scratch operand']
  #allocation3 [shape = 's32[]', space=sflag, size = 0x4, offset = 0, fixed_abs, tag = 'sflag constant byte address 0x0 - dummy sync flag']
  #allocation4 [shape = 'u32[0]{0}', space=smem, size = 0, offset = 0, fixed_abs, tag = 'smem constant byte address 0x0 - null']
  %s0 = inlined_call_operand.hbm [shape: f32[64,128], index: 0, kind: input, shape index: {}]
  %s1 = inlined_call_operand.hbm [shape: f32[1,8,128], index: 1, kind: output, shape index: {}]
  %s2 = sld [smem:[#allocation0]]
  $region2: #{tpu_custom_call.1} parent=0
    _
  %s4 = ssub.s32 1, %s2
  %s5 = scalar_select 0, %s4, %s2
  %s7 = sshll.u32 1, 14
  %s8 = sxor.u32 4294967295, %s7
  %s10 = sshll.u32 %s0, 4
  %s11 = int_to_ptr.hbm [resolvable:$true] %s10
  %s12 = sshll.u32 %s1, 4
  %s13 = int_to_ptr.hbm [resolvable:$true] %s12
  %16 = dma.general %s11, 128, %s13, [#allocation2], [#allocation3], [#allocation4], 0, 0
  %s17 = smul.u32 8, 1
  %s18 = sshll.u32 %s17, 4
  %19 = dma.done [#allocation2], %s18
  %20 = vsyncmov [#allocation2]
  %s21 = vpop.sfrf %20
  %p22 = scmp.eq.s32.totalorder %s21, 0
  %p23 = pneg %p22
  %25 = shalt.err (%p23)

</llo_original>
